<compile_context>
chip_gen: v7x
topology: tpu7x:2x2x1
jax: 0.10.0
libtpu: 0.0.40
codegen_flags: <defaults>
</compile_context>

<pallas_src>
import math

import jax
import jax.numpy as jnp
from jax.experimental import pallas as pl
from jax.experimental.pallas import tpu as pltpu


# ----------------------------- constants -------------------------------------

_LANE_CHOICES = (512, 256, 128)       # lane-dense last dims (multiples of 128)
_TARGET_BLOCK_BYTES = 2 << 20         # ~2 MiB per buffer; 3 arrays x 2 bufs = 12 MiB
_SMALL_OPERAND_MAX_BYTES = 1 << 20    # pinned (un-tiled) operand budget
_MIN_PALLAS_ELEMS = 1 << 16           # below this, XLA fusion beats a custom call


def _round_up(a, b):
    return (a + b - 1) // b * b


def _sublane(*dtypes):
    # sublanes per packed vreg tile: f32 -> 8, bf16 -> 16, int8/fp8 -> 32
    return max(max(8, 32 // jnp.dtype(d).itemsize) for d in dtypes)


def _pick_cols(n):
    for c in _LANE_CHOICES:
        if n % c == 0:
            return c
    return None


# ----------------------------- kernels ---------------------------------------

def _scale2_kernel(x_ref, o_ref):
    # o = 2 * x  (integer literal keeps dtype, matching torch's 2 * x)
    o_ref[...] = x_ref[...] * 2


def _make_axpy_kernel(c_a, c_b, out_dtype):
    # o = c_a * a + c_b * b, promoting to out_dtype and broadcasting in-kernel.
    def kernel(a_ref, b_ref, o_ref):
        a = a_ref[...].astype(out_dtype)
        b = b_ref[...].astype(out_dtype)
        o_ref[...] = a * c_a + b * c_b
    return kernel


# ----------------------------- flat (lane-dense) path -------------------------

def _flat_call(kernel, out_dtype, arrays, ref_shape):
    """Elementwise kernel over a lane-dense (rows, cols) view of ref_shape.

    Every array either has ref_shape (tiled along rows) or size 1 (pinned as a
    (1, 1) block and broadcast inside the kernel).  Returns None if the size
    doesn't admit an exact lane-dense reshape (caller falls back to jnp)."""
    n = math.prod(ref_shape)
    cols = _pick_cols(n)
    if cols is None:
        return None
    rows = n // cols

    itemsize = max(jnp.dtype(out_dtype).itemsize,
                   *(jnp.dtype(a.dtype).itemsize for a in arrays))
    sub = _sublane(out_dtype, *(a.dtype for a in arrays))
    cap = max(sub, (_TARGET_BLOCK_BYTES // (cols * itemsize)) // sub * sub)
    half = _round_up(pl.cdiv(rows, 2), sub)   # >=2 grid steps when possible (v7x 2 TCs)
    block_rows = min(cap, half, rows)
    grid = (pl.cdiv(rows, block_rows),)

    specs, views = [], []
    for a in arrays:
        if a.size == 1:
            views.append(a.reshape(1, 1))
            specs.append(pl.BlockSpec((1, 1), lambda i: (0, 0)))
        else:
            views.append(a.reshape(rows, cols))
            specs.append(pl.BlockSpec((block_rows, cols), lambda i: (i, 0)))

    out = pl.pallas_call(
        kernel,
        out_shape=jax.ShapeDtypeStruct((rows, cols), out_dtype),
        grid=grid,
        in_specs=specs,
        out_specs=pl.BlockSpec((block_rows, cols), lambda i: (i, 0)),
        compiler_params=pltpu.CompilerParams(
            dimension_semantics=("parallel",)),
    )(*views)
    return out.reshape(ref_shape)


# ----------------------------- broadcast path ---------------------------------

def _bcast_call(kernel, out_dtype, full, small):
    """full has the output shape; small broadcasts against it.

    full (and the output) are tiled along the leading dim; small is passed
    un-materialized (pinned or tiled on its leading dim only) and broadcast
    inside the kernel.  Returns None when the scheme doesn't apply."""
    ndim = full.ndim
    if ndim < 2:
        return None
    small = small.reshape((1,) * (ndim - small.ndim) + small.shape)  # free
    if small.nbytes > _SMALL_OPERAND_MAX_BYTES:
        return None

    dim0 = full.shape[0]
    itemsize = max(jnp.dtype(full.dtype).itemsize, jnp.dtype(out_dtype).itemsize)
    slice_bytes = (full.size // max(dim0, 1)) * itemsize
    if slice_bytes == 0 or slice_bytes > _TARGET_BLOCK_BYTES:
        return None

    cap0 = max(1, _TARGET_BLOCK_BYTES // slice_bytes)
    block0 = min(cap0, max(1, pl.cdiv(dim0, 2)), dim0)   # >=2 steps (v7x dual-TC)
    sub = _sublane(out_dtype, full.dtype, small.dtype)
    if ndim == 2 and block0 < dim0:
        # leading dim is the sublane dim: keep it a sublane multiple
        block0 = max(sub, block0 // sub * sub)
        block0 = min(block0, dim0)
    grid = (pl.cdiv(dim0, block0),)

    lead_match = small.shape[0] == dim0
    full_block = (block0,) + full.shape[1:]
    small_block = ((block0 if lead_match else 1),) + small.shape[1:]

    def full_map(i):
        return (i,) + (0,) * (ndim - 1)

    def small_map(i):
        return ((i if lead_match else 0),) + (0,) * (ndim - 1)

    return pl.pallas_call(
        kernel,
        out_shape=jax.ShapeDtypeStruct(full.shape, out_dtype),
        grid=grid,
        in_specs=[pl.BlockSpec(full_block, full_map),
                  pl.BlockSpec(small_block, small_map)],
        out_specs=pl.BlockSpec(full_block, full_map),
        compiler_params=pltpu.CompilerParams(
            dimension_semantics=("parallel",)),
    )(full, small)


# ----------------------------- forward ---------------------------------------

def torch_model_forward(x, y=None, *, min_pallas_elems=_MIN_PALLAS_ELEMS):
    """JAX/Pallas equivalent of TorchModel.forward."""
    if y is None:
        if x.size < max(min_pallas_elems, 1):
            return x * 2                          # tiny: let XLA fuse it
        out = _flat_call(_scale2_kernel, x.dtype, [x], x.shape)
        return out if out is not None else x * 2

    out_dtype = jnp.result_type(x.dtype, y.dtype)
    out_shape = jnp.broadcast_shapes(x.shape, y.shape)
    n = math.prod(out_shape)

    def jnp_ref():  # correct fallback, fully fused by XLA
        return 3 * x.astype(out_dtype) + 4 * y.astype(out_dtype)

    if n < max(min_pallas_elems, 1):
        return jnp_ref()

    if x.shape == y.shape:
        kern = _make_axpy_kernel(3, 4, out_dtype)
        out = _flat_call(kern, out_dtype, [x, y], x.shape)
        return out if out is not None else jnp_ref()

    # One operand carries the full output shape; broadcast the other in-kernel.
    if tuple(x.shape) == tuple(out_shape):
        full, small, c_full, c_small = x, y, 3, 4
    elif tuple(y.shape) == tuple(out_shape):
        full, small, c_full, c_small = y, x, 4, 3
    else:
        return jnp_ref()    # both operands broadcast (rare): let XLA fuse it

    kern = _make_axpy_kernel(c_full, c_small, out_dtype)
    if small.size == 1:
        out = _flat_call(kern, out_dtype, [full, small], full.shape)
    else:
        out = _bcast_call(kern, out_dtype, full, small)
    return out if out is not None else jnp_ref()


# ----------------------------- test ------------------------------------------

if __name__ == "__main__":
    key = jax.random.PRNGKey(0)
    kx, ky, ka, kb = jax.random.split(key, 4)

    # Small NCHW shapes implied by the spec: batch=2, channels=4, 16x16.
    x = jax.random.normal(kx, (2, 4, 16, 16), dtype=jnp.float32)
    y = jax.random.normal(ky, (2, 4, 16, 16), dtype=jnp.float32)

    # Force the Pallas path at the small spec shapes.
    out1 = torch_model_forward(x, min_pallas_elems=0)
    jax.block_until_ready(out1)
    assert jnp.allclose(out1, 2 * x, atol=1e-6)

    out2 = torch_model_forward(x, y, min_pallas_elems=0)
    jax.block_until_ready(out2)
    assert jnp.allclose(out2, 3 * x + 4 * y, atol=1e-6)

    # Broadcastable y: stays small, broadcast happens inside the kernel.
    yb = jax.random.normal(ky, (1, 4, 1, 16), dtype=jnp.float32)
    out_b = torch_model_forward(x, yb, min_pallas_elems=0)
    jax.block_until_ready(out_b)
    assert out_b.shape == x.shape
    assert jnp.allclose(out_b, 3 * x + 4 * yb, atol=1e-6)

    # Scalar y (0-d tensor) through the pinned-block path.
    ys = jnp.asarray(5.0, dtype=jnp.float32)
    out_s = torch_model_forward(x, ys, min_pallas_elems=0)
    jax.block_until_ready(out_s)
    assert jnp.allclose(out_s, 3 * x + 20.0, atol=1e-6)

    # Mixed precision: promotion happens in-kernel (no wrapper astype copies).
    xb16 = x.astype(jnp.bfloat16)
    out_m = torch_model_forward(xb16, y, min_pallas_elems=0)
    jax.block_until_ready(out_m)
    assert out_m.dtype == jnp.float32
    assert jnp.allclose(out_m, 3 * xb16.astype(jnp.float32) + 4 * y, atol=1e-5)

    # Integer dtype fidelity (2*x stays int32, as in torch).
    xi = jnp.arange(2 * 4 * 16 * 16, dtype=jnp.int32).reshape(2, 4, 16, 16)
    out_i = torch_model_forward(xi, min_pallas_elems=0)
    jax.block_until_ready(out_i)
    assert out_i.dtype == jnp.int32 and jnp.array_equal(out_i, 2 * xi)

    # Larger tensor exercising a multi-step grid (pipelined DMA / 2-TC split).
    xl = jax.random.normal(ka, (16, 4, 64, 128), dtype=jnp.float32)
    yl = jax.random.normal(kb, (16, 4, 64, 128), dtype=jnp.float32)
    out3 = torch_model_forward(xl, yl)
    jax.block_until_ready(out3)
    assert jnp.allclose(out3, 3 * xl + 4 * yl, atol=1e-5)

    # Default dispatch at tiny shapes uses plain jnp (launch-overhead path).
    out4 = torch_model_forward(x)
    jax.block_until_ready(out4)
    assert jnp.allclose(out4, 2 * x, atol=1e-6)

    print("KERNEL_OK")
</pallas_src>

<mosaic_0001>
module attributes {stable_mosaic.version = 11 : i64} {
  func.func @_scale2_kernel(%arg0: i32, %arg1: memref<4x512xf32, #tpu.memory_space<vmem>>, %arg2: memref<4x512xf32, #tpu.memory_space<vmem>>) attributes {dimension_semantics = [#tpu.dimension_semantics<parallel>], iteration_bounds = array<i64: 1>, scalar_prefetch = 0 : i64, scratch_operands = 0 : i64, tpu.core_type = #tpu.core_type<tc>, window_params = [{transform_indices = @transform_0, window_bounds = array<i64: 4, 512>}, {transform_indices = @transform_1, window_bounds = array<i64: 4, 512>}]} {
    %c0 = arith.constant 0 : index
    %c0_0 = arith.constant 0 : index
    %0 = vector.load %arg1[%c0, %c0_0] : memref<4x512xf32, #tpu.memory_space<vmem>>, vector<4x512xf32>
    %cst = arith.constant 2.000000e+00 : f32
    %1 = vector.broadcast %cst : f32 to vector<4x512xf32>
    %2 = arith.mulf %0, %1 : vector<4x512xf32>
    %c0_1 = arith.constant 0 : index
    %c0_2 = arith.constant 0 : index
    %3 = vector.load %arg2[%c0_1, %c0_2] : memref<4x512xf32, #tpu.memory_space<vmem>>, vector<4x512xf32>
    tpu.vector_store %arg2[%c0_1, %c0_2], %2 {strides = array<i32>} : memref<4x512xf32, #tpu.memory_space<vmem>>, vector<4x512xf32>,
    return
  }
  func.func @transform_0(%arg0: i32) -> (i32, i32) {
    %c0_i32 = arith.constant 0 : i32
    %c0_i32_0 = arith.constant 0 : i32
    return %arg0, %c0_i32 : i32, i32
  }
  func.func @transform_1(%arg0: i32) -> (i32, i32) {
    %c0_i32 = arith.constant 0 : i32
    %c0_i32_0 = arith.constant 0 : i32
    return %arg0, %c0_i32 : i32, i32
  }
}

</mosaic_0001>

<llo_original>
// kernel: tpu_custom_call.1
$region0: #{tpu_custom_call.1}
  #allocation0 [shape = 'u32[]', space=smem, size = 0x4, offset = 0x4, fixed_abs, tag = 'smem constant byte address 0x4 - core index']
  #allocation1 [shape = 'u32[144,128]{1,0:T(1,128)}', space=vmem, size = 0x12000, scoped, tag = 'internal scratch']
  %s0 = inlined_call_operand.hbm [shape: f32[4,512], index: 0, kind: input, shape index: {}]
  %s1 = inlined_call_operand.hbm [shape: f32[4,512], index: 1, kind: output, shape index: {}]
  %s2 = sld [smem:[#allocation0]]
  $region18: #{tpu_custom_call.1} parent=0
    _
  %s4 = ssub.s32 1, %s2
  %s5 = scalar_select 0, %s4, %s2
  $region1: #{tpu_custom_call.1} parent=0
    #allocation2 [shape = 'u8[8192]{0}', space=vmem, size = 0x2000, scoped, tag = 'input window, operand 0, single buffered']
    #allocation3 [shape = 's32[1]{0}', space=sflag, size = 0x4, scoped, tag = 'scoped memory for tpu_custom_call.1']
    #allocation4 [shape = 's32[1]{0}', space=sflag, size = 0x4, scoped, tag = 'scoped memory for tpu_custom_call.1']
    #allocation5 [shape = 'u8[8192]{0}', space=vmem, size = 0x2000, scoped, tag = 'output window, operand 0, single buffered']
    %6 = vsyncpa [#allocation3], 0
    %7 = vsyncpa [#allocation4], 0
    // Predicated region
    $region2: #{tpu_custom_call.1} parent=1 // pred_check
      _
    $region3: #{tpu_custom_call.1} parent=1 // pred_check_branch
      %9 = sbr.rel (0) target = $region5
    $region4: #{tpu_custom_call.1} parent=1 // pred_region
      %s11 = ssub.s32 256, 256
      %12 = vsyncadd [#allocation3], %s11
      %s14 = sshll.u32 [#allocation2], 4
      %s15 = int_to_ptr.vmem [resolvable:$true] %s14
      %17 = dma.hbm_to_vmem [thread:$0]  %s0, 256, %s15, [#allocation3]
    $region5: #{tpu_custom_call.1} parent=1 // pred_fallthru
      _
    // Predicated region
    $region6: #{tpu_custom_call.1} parent=1 // pred_check
      _
    $region7: #{tpu_custom_call.1} parent=1 // pred_check_branch
      %19 = sbr.rel (0) target = $region9
    $region8: #{tpu_custom_call.1} parent=1 // pred_region
      %20 = dma.done [#allocation3], 256
    $region9: #{tpu_custom_call.1} parent=1 // pred_fallthru
      _
    %v21 = vld [vmem:[#allocation2] sm:$0xff]
    %v22 = vld [vmem:[#allocation2 + $0x8] sm:$0xff]
    %v23 = vmul.f32 %v21, 2.0
    %v24 = vmul.f32 %v22, 2.0
    %25 = vst [vmem:[#allocation5] sm:$0xff] %v23
    %26 = vst [vmem:[#allocation5 + $0x8] sm:$0xff] %v24
    // Predicated region
    $region10: #{tpu_custom_call.1} parent=1 // pred_check
      _
    $region11: #{tpu_custom_call.1} parent=1 // pred_check_branch
      %28 = sbr.rel (0) target = $region13
    $region12: #{tpu_custom_call.1} parent=1 // pred_region
      %s30 = ssub.s32 256, 256
      %31 = vsyncadd [#allocation4], %s30
      %s33 = sshll.u32 [#allocation5], 4
      %s34 = int_to_ptr.vmem [resolvable:$true] %s33
      %36 = dma.vmem_to_hbm [thread:$0]  %s34, 256, %s1, [#allocation4]
    $region13: #{tpu_custom_call.1} parent=1 // pred_fallthru
      _
    // Predicated region
    $region14: #{tpu_custom_call.1} parent=1 // pred_check
      _
    $region15: #{tpu_custom_call.1} parent=1 // pred_check_branch
      %38 = sbr.rel (0) target = $region17
    $region16: #{tpu_custom_call.1} parent=1 // pred_region
      %39 = dma.done [#allocation4], 256
    $region17: #{tpu_custom_call.1} parent=1 // pred_fallthru
      _
    %40 = vsyncpa [#allocation3], 1
    %41 = vsyncpa [#allocation4], 1

</llo_original>
